<compile_context>
chip_gen: v7x
topology: tpu7x:2x2x1
jax: 0.10.0
libtpu: 0.0.40
codegen_flags: <defaults>
</compile_context>

<pallas_src>
import math

import jax
import jax.numpy as jnp
import numpy as np
from jax import lax
from jax.experimental import pallas as pl
from jax.experimental.pallas import tpu as pltpu


# ----------------------------------------------------------------------------
# Fused kernel: pool (max+avg) -> LayerNorm(2C) -> Linear(2C->out) -> +bias
# (gamma folded into w_ref, beta folded into pos_ref by the wrapper)
# ----------------------------------------------------------------------------
def _fused_kernel(x_ref, halo_ref, w_ref, pos_ref, o_ref):
    # x_ref   : (TH, 2, Wo, 2C); x_ref[il, p, j, 0:C]  = x[2*(row0+il)+p, 2*j,   :]
    #                            x_ref[il, p, j, C:2C] = x[2*(row0+il)+p, 2*j+1, :]
    # halo_ref: (1, 1, Wo, 2C)  = input row (2*row0 - 1); garbage for the first
    #                             row tile (masked in-kernel).
    t = pl.program_id(1)
    TH, _, Wo, twoC = x_ref.shape
    C = twoC // 2
    f32 = jnp.float32

    xt = x_ref[...].astype(f32)
    r0 = xt[:, 0]                        # input rows 2*i
    r1 = xt[:, 1]                        # input rows 2*i + 1
    halo = halo_ref[0, 0].astype(f32)    # input row  2*row0 - 1

    if TH > 1:
        rm1 = jnp.concatenate([halo[None], r1[:-1]], axis=0)   # rows 2*i - 1
    else:
        rm1 = halo[None]

    def split(s):
        e = s[:, :, :C]                          # column 2*j
        o = s[:, :, C:]                          # column 2*j + 1
        om = pltpu.roll(o, shift=1, axis=1)      # column 2*j - 1 (wraps at j==0)
        return e, o, om

    e0, o0, om0 = split(r0)
    e1, o1, om1 = split(r1)
    em, o_m, omm = split(rm1)

    row_idx = lax.broadcasted_iota(jnp.int32, (TH, Wo, 1), 0)
    col_idx = lax.broadcasted_iota(jnp.int32, (TH, Wo, 1), 1)
    top = jnp.logical_and(row_idx == 0, t == 0)   # global top padding row
    col0 = col_idx == 0                           # left padding column
    topcol = jnp.logical_or(top, col0)

    # MaxPool2d(3, 2, 1): implicit -inf padding.
    neg = f32(-jnp.inf)
    m = jnp.maximum(jnp.maximum(e0, o0), jnp.maximum(e1, o1))
    m = jnp.maximum(m, jnp.where(top, neg, jnp.maximum(em, o_m)))
    m = jnp.maximum(m, jnp.where(col0, neg, jnp.maximum(om0, om1)))
    m = jnp.maximum(m, jnp.where(topcol, neg, omm))

    # AvgPool2d(3, 2, 1) count_include_pad=True: zero padding, /9, f32 accum.
    s = (e0 + o0) + (e1 + o1)
    s = s + jnp.where(top, f32(0), em + o_m)
    s = s + jnp.where(col0, f32(0), om0 + om1)
    s = s + jnp.where(topcol, f32(0), omm)
    a = s * f32(1.0 / 9.0)

    # LayerNorm statistics over the virtual concat [max || avg] (2C features).
    inv2c = f32(1.0 / (2 * C))
    mean = (jnp.sum(m, -1, keepdims=True) + jnp.sum(a, -1, keepdims=True)) * inv2c
    mc = m - mean
    ac = a - mean
    var = (jnp.sum(mc * mc, -1, keepdims=True)
           + jnp.sum(ac * ac, -1, keepdims=True)) * inv2c
    inv = lax.rsqrt(var + 1e-5)

    feat = jnp.concatenate([mc, ac], axis=-1) * inv            # (TH, Wo, 2C)

    # Single matmul against the gamma-folded (2C, out_dim) weight; beta and the
    # alpha-scaled positional grid are already merged into pos_ref.
    feat = feat.reshape(TH * Wo, twoC).astype(w_ref.dtype)
    y = jnp.dot(feat, w_ref[...], preferred_element_type=f32)  # (TH*Wo, out_dim)
    y = y + pos_ref[...]
    o_ref[...] = y.astype(o_ref.dtype)


# ----------------------------------------------------------------------------
# Sinusoidal positional embedding tables (host-side parameter setup, plain JAX).
# Matches SinusoidalPositionalEmbedding(embedding_dim=out_dim//2, padding_idx=0,
# div_half_dim=False) followed by make_grid2d(h, w): positions are 1..n.
# ----------------------------------------------------------------------------
def _spe_table(n, embedding_dim):
    half = embedding_dim // 2
    scale = math.log(10000.0) / (half - 1)           # div_half_dim=False
    freqs = jnp.exp(jnp.arange(half, dtype=jnp.float32) * -scale)
    pos = jnp.arange(1, n + 1, dtype=jnp.float32)[:, None] * freqs[None, :]
    return jnp.concatenate([jnp.sin(pos), jnp.cos(pos)], axis=1)   # (n, emb)


def make_pos_grid(Ho, Wo, out_dim):
    emb = out_dim // 2
    x_emb = _spe_table(Wo, emb)                      # varies along width
    y_emb = _spe_table(Ho, emb)                      # varies along height
    xg = jnp.broadcast_to(x_emb[None, :, :], (Ho, Wo, emb))
    yg = jnp.broadcast_to(y_emb[:, None, :], (Ho, Wo, emb))
    # channel order matches torch.cat([x_grid, y_grid], dim=1) in NCHW.
    return jnp.concatenate([xg, yg], axis=-1)        # (Ho, Wo, out_dim)


# ----------------------------------------------------------------------------
# Wrapper
# ----------------------------------------------------------------------------
def _pick_tile_ho(Ho, Wo, C, itemsize):
    # Largest row tile whose input block stays around ~1 MiB so the
    # double-buffered pipeline comfortably fits scoped VMEM on v5e/v6e/v7x,
    # subject to tiling constraints (block sublane dim multiple of 8 or full).
    per_row = 2 * Wo * 2 * C * itemsize
    target = max(1, (1 << 20) // max(1, per_row))
    for th in range(min(target, Ho), 0, -1):
        if Ho % th == 0 and ((th * Wo) % 8 == 0 or th == Ho):
            return th
    return Ho


def pool_downsample(x, params, input_resolution, out_dim, tile_ho=None):
    H, W = input_resolution
    B, L, C = x.shape
    assert L == H * W and H % 2 == 0 and W % 2 == 0
    assert out_dim % 4 == 0
    assert jnp.issubdtype(x.dtype, jnp.floating), "pooling assumes float input"
    Ho, Wo = H // 2, W // 2
    L4 = Ho * Wo
    dtype = x.dtype

    if tile_ho is None:
        TH = _pick_tile_ho(Ho, Wo, C, jnp.dtype(dtype).itemsize)
    else:
        TH = tile_ho
    assert Ho % TH == 0 and ((TH * Wo) % 8 == 0 or TH == Ho)
    nt = Ho // TH

    # Free metadata-only reshape: rows pair-split (phase 0/1 as a major dim),
    # column pairs packed into the lane dim as [even-col C | odd-col C].
    x5d = x.reshape(B, Ho, 2, Wo, 2 * C)

    # Fold the LayerNorm affine into the reduction weight / bias (parameters
    # only, done once per call; exact rewrite of (nf*gamma+beta) @ W.T):
    #   W'   = diag(gamma) @ W.T           (2C, out_dim)
    #   bias = beta @ W.T + alpha * pos    (L4, out_dim)
    gamma = params["gamma"].astype(jnp.float32)
    beta = params["beta"].astype(jnp.float32)
    w_t = params["w_red"].T.astype(jnp.float32)               # (2C, out_dim)
    w = (gamma[:, None] * w_t).astype(dtype)                  # (2C, out_dim)
    pos_bias = (params["alpha"][0] *
                params["pos_grid"].reshape(L4, out_dim).astype(jnp.float32)
                + (beta @ w_t)[None, :]).astype(jnp.float32)  # (L4, out_dim)

    x_spec = pl.BlockSpec((None, TH, 2, Wo, 2 * C), lambda b, t: (b, t, 0, 0, 0))
    # One-row top halo: row (2*t*TH - 1) = odd phase of output row (t*TH - 1);
    # clamped to 0 at t == 0 (content is masked in-kernel).
    halo_spec = pl.BlockSpec(
        (None, 1, 1, Wo, 2 * C),
        lambda b, t: (b, jnp.maximum(t * TH - 1, 0), 1, 0, 0))
    w_spec = pl.BlockSpec((2 * C, out_dim), lambda b, t: (0, 0))
    pos_spec = pl.BlockSpec((TH * Wo, out_dim), lambda b, t: (t, 0))
    out_spec = pl.BlockSpec((None, TH * Wo, out_dim), lambda b, t: (b, t, 0))

    out = pl.pallas_call(
        _fused_kernel,
        grid=(B, nt),
        in_specs=[x_spec, halo_spec, w_spec, pos_spec],
        out_specs=out_spec,
        out_shape=jax.ShapeDtypeStruct((B, L4, out_dim), dtype),
        compiler_params=pltpu.CompilerParams(
            dimension_semantics=("parallel", "parallel")),
    )(x5d, x5d, w, pos_bias)
    return out


# ----------------------------------------------------------------------------
# Pure-JAX reference (mirrors the PyTorch forward) for a correctness check.
# ----------------------------------------------------------------------------
def reference(x, gamma, beta, w_red, alpha, pos_grid, H, W, out_dim):
    B, L, C = x.shape
    xi = x.reshape(B, H, W, C).transpose(0, 3, 1, 2)            # NCHW
    pad = [(0, 0), (0, 0), (1, 1), (1, 1)]
    mp = lax.reduce_window(xi, jnp.array(-jnp.inf, xi.dtype), lax.max,
                           (1, 1, 3, 3), (1, 1, 2, 2), pad)
    ap = lax.reduce_window(xi, jnp.array(0.0, xi.dtype), lax.add,
                           (1, 1, 3, 3), (1, 1, 2, 2), pad) / 9.0
    cat = jnp.concatenate([mp, ap], axis=1)                     # (B, 2C, Ho, Wo)
    feat = cat.transpose(0, 2, 3, 1).reshape(B, (H // 2) * (W // 2), 2 * C)
    mean = feat.mean(-1, keepdims=True)
    var = jnp.mean((feat - mean) ** 2, -1, keepdims=True)
    nf = (feat - mean) / jnp.sqrt(var + 1e-5) * gamma + beta
    y = nf @ w_red.T
    y = y + alpha[0] * pos_grid.reshape(1, -1, out_dim)
    return y


if __name__ == "__main__":
    B, H, W = 2, 16, 16
    dim, out_dim = 8, 16                 # dim even, out_dim % 4 == 0
    L = H * W

    key = jax.random.PRNGKey(0)
    k1, k2, k3, k4 = jax.random.split(key, 4)
    x = jax.random.normal(k1, (B, L, dim), dtype=jnp.float32)

    params = {
        "gamma": 1.0 + 0.1 * jax.random.normal(k2, (2 * dim,), jnp.float32),
        "beta": 0.1 * jax.random.normal(k3, (2 * dim,), jnp.float32),
        "w_red": 0.1 * jax.random.normal(k4, (out_dim, 2 * dim), jnp.float32),
        "alpha": jnp.array([0.5], dtype=jnp.float32),
        "pos_grid": make_pos_grid(H // 2, W // 2, out_dim),
    }

    ref = reference(x, params["gamma"], params["beta"], params["w_red"],
                    params["alpha"], params["pos_grid"], H, W, out_dim)

    # Run both a multi-row-tile config (exercises the halo path) and the
    # auto-picked tile size.
    out = None
    for th in (2, None):
        out = pool_downsample(x, params, (H, W), out_dim, tile_ho=th)
        out = jax.block_until_ready(out)
        np.testing.assert_allclose(np.asarray(out), np.asarray(ref),
                                   rtol=1e-4, atol=1e-4)

    assert out.shape == (B, (H // 2) * (W // 2), out_dim)
    print("KERNEL_OK")
</pallas_src>

<mosaic_0001>
module attributes {stable_mosaic.version = 11 : i64} {
  func.func @_fused_kernel(%arg0: i32, %arg1: i32, %arg2: memref<1x2x2x8x16xf32, #tpu.memory_space<vmem>>, %arg3: memref<1x1x1x8x16xf32, #tpu.memory_space<vmem>>, %arg4: memref<16x16xf32, #tpu.memory_space<vmem>>, %arg5: memref<16x16xf32, #tpu.memory_space<vmem>>, %arg6: memref<1x16x16xf32, #tpu.memory_space<vmem>>) attributes {dimension_semantics = [#tpu.dimension_semantics<parallel>, #tpu.dimension_semantics<parallel>], iteration_bounds = array<i64: 2, 4>, scalar_prefetch = 0 : i64, scratch_operands = 0 : i64, tpu.core_type = #tpu.core_type<tc>, window_params = [{transform_indices = @transform_0, window_bounds = array<i64: 1, 2, 2, 8, 16>}, {transform_indices = @transform_1, window_bounds = array<i64: 1, 1, 1, 8, 16>}, {pipeline_mode = #tpu.pipeline_mode<synchronous>, transform_indices = @transform_2, window_bounds = array<i64: 16, 16>}, {transform_indices = @transform_3, window_bounds = array<i64: 16, 16>}, {transform_indices = @transform_4, window_bounds = array<i64: 1, 16, 16>}]} {
    %c0 = arith.constant 0 : index
    %c0_0 = arith.constant 0 : index
    %c0_1 = arith.constant 0 : index
    %c0_2 = arith.constant 0 : index
    %c0_3 = arith.constant 0 : index
    %0 = vector.load %arg2[%c0, %c0_0, %c0_1, %c0_2, %c0_3] : memref<1x2x2x8x16xf32, #tpu.memory_space<vmem>>, vector<1x2x2x8x16xf32>
    %1 = vector.shape_cast %0 : vector<1x2x2x8x16xf32> to vector<2x2x8x16xf32>
    %2 = vector.extract_strided_slice %1 {offsets = [0, 0, 0, 0], sizes = [2, 1, 8, 16], strides = [1, 1, 1, 1]} : vector<2x2x8x16xf32> to vector<2x1x8x16xf32>
    %3 = vector.shape_cast %2 : vector<2x1x8x16xf32> to vector<2x8x16xf32>
    %4 = vector.extract_strided_slice %1 {offsets = [0, 1, 0, 0], sizes = [2, 1, 8, 16], strides = [1, 1, 1, 1]} : vector<2x2x8x16xf32> to vector<2x1x8x16xf32>
    %5 = vector.shape_cast %4 : vector<2x1x8x16xf32> to vector<2x8x16xf32>
    %c0_4 = arith.constant 0 : index
    %c0_5 = arith.constant 0 : index
    %c0_6 = arith.constant 0 : index
    %c0_7 = arith.constant 0 : index
    %c0_8 = arith.constant 0 : index
    %6 = vector.load %arg3[%c0_4, %c0_5, %c0_6, %c0_7, %c0_8] : memref<1x1x1x8x16xf32, #tpu.memory_space<vmem>>, vector<1x1x1x8x16xf32>
    %7 = vector.shape_cast %6 : vector<1x1x1x8x16xf32> to vector<8x16xf32>
    %8 = vector.shape_cast %7 : vector<8x16xf32> to vector<1x8x16xf32>
    %9 = vector.extract_strided_slice %5 {offsets = [0, 0, 0], sizes = [1, 8, 16], strides = [1, 1, 1]} : vector<2x8x16xf32> to vector<1x8x16xf32>
    %10 = tpu.concatenate %8, %9 in 0 : vector<1x8x16xf32>, vector<1x8x16xf32> -> vector<2x8x16xf32>
    %11 = vector.extract_strided_slice %3 {offsets = [0, 0, 0], sizes = [2, 8, 8], strides = [1, 1, 1]} : vector<2x8x16xf32> to vector<2x8x8xf32>
    %12 = vector.extract_strided_slice %3 {offsets = [0, 0, 8], sizes = [2, 8, 8], strides = [1, 1, 1]} : vector<2x8x16xf32> to vector<2x8x8xf32>
    %c1_i32 = arith.constant 1 : i32
    %13 = tpu.dynamic_rotate %12 by %c1_i32 dim 1 : vector<2x8x8xf32>, i32 -> vector<2x8x8xf32>
    %14 = vector.extract_strided_slice %5 {offsets = [0, 0, 0], sizes = [2, 8, 8], strides = [1, 1, 1]} : vector<2x8x16xf32> to vector<2x8x8xf32>
    %15 = vector.extract_strided_slice %5 {offsets = [0, 0, 8], sizes = [2, 8, 8], strides = [1, 1, 1]} : vector<2x8x16xf32> to vector<2x8x8xf32>
    %c1_i32_9 = arith.constant 1 : i32
    %16 = tpu.dynamic_rotate %15 by %c1_i32_9 dim 1 : vector<2x8x8xf32>, i32 -> vector<2x8x8xf32>
    %17 = vector.extract_strided_slice %10 {offsets = [0, 0, 0], sizes = [2, 8, 8], strides = [1, 1, 1]} : vector<2x8x16xf32> to vector<2x8x8xf32>
    %18 = vector.extract_strided_slice %10 {offsets = [0, 0, 8], sizes = [2, 8, 8], strides = [1, 1, 1]} : vector<2x8x16xf32> to vector<2x8x8xf32>
    %c1_i32_10 = arith.constant 1 : i32
    %19 = tpu.dynamic_rotate %18 by %c1_i32_10 dim 1 : vector<2x8x8xf32>, i32 -> vector<2x8x8xf32>
    %20 = tpu.iota {dimensions = array<i32: 0>} : vector<2x8x1xi32>
    %21 = tpu.iota {dimensions = array<i32: 1>} : vector<2x8x1xi32>
    %c0_i32 = arith.constant 0 : i32
    %22 = vector.broadcast %c0_i32 : i32 to vector<2x8x1xi32>
    %23 = arith.cmpi eq, %20, %22 : vector<2x8x1xi32>
    %c0_i32_11 = arith.constant 0 : i32
    %24 = arith.cmpi eq, %arg1, %c0_i32_11 : i32
    %25 = vector.broadcast %24 : i1 to vector<2x8x1xi1>
    %26 = arith.andi %23, %25 : vector<2x8x1xi1>
    %c0_i32_12 = arith.constant 0 : i32
    %27 = vector.broadcast %c0_i32_12 : i32 to vector<2x8x1xi32>
    %28 = arith.cmpi eq, %21, %27 : vector<2x8x1xi32>
    %29 = arith.ori %26, %28 : vector<2x8x1xi1>
    %30 = arith.maximumf %11, %12 : vector<2x8x8xf32>
    %31 = arith.maximumf %14, %15 : vector<2x8x8xf32>
    %32 = arith.maximumf %30, %31 : vector<2x8x8xf32>
    %33 = arith.maximumf %17, %18 : vector<2x8x8xf32>
    %cst = arith.constant 0xFF800000 : f32
    %34 = vector.shape_cast %26 : vector<2x8x1xi1> to vector<2x8x1xi1>
    %35 = vector.broadcast %34 : vector<2x8x1xi1> to vector<2x8x8xi1>
    %36 = vector.broadcast %cst : f32 to vector<2x8x8xf32>
    %37 = arith.select %35, %36, %33 : vector<2x8x8xi1>, vector<2x8x8xf32>
    %38 = arith.maximumf %32, %37 : vector<2x8x8xf32>
    %39 = arith.maximumf %13, %16 : vector<2x8x8xf32>
    %cst_13 = arith.constant 0xFF800000 : f32
    %40 = vector.shape_cast %28 : vector<2x8x1xi1> to vector<2x8x1xi1>
    %41 = vector.broadcast %40 : vector<2x8x1xi1> to vector<2x8x8xi1>
    %42 = vector.broadcast %cst_13 : f32 to vector<2x8x8xf32>
    %43 = arith.select %41, %42, %39 : vector<2x8x8xi1>, vector<2x8x8xf32>
    %44 = arith.maximumf %38, %43 : vector<2x8x8xf32>
    %cst_14 = arith.constant 0xFF800000 : f32
    %45 = vector.shape_cast %29 : vector<2x8x1xi1> to vector<2x8x1xi1>
    %46 = vector.broadcast %45 : vector<2x8x1xi1> to vector<2x8x8xi1>
    %47 = vector.broadcast %cst_14 : f32 to vector<2x8x8xf32>
    %48 = arith.select %46, %47, %19 : vector<2x8x8xi1>, vector<2x8x8xf32>
    %49 = arith.maximumf %44, %48 : vector<2x8x8xf32>
    %50 = arith.addf %11, %12 : vector<2x8x8xf32>
    %51 = arith.addf %14, %15 : vector<2x8x8xf32>
    %52 = arith.addf %50, %51 : vector<2x8x8xf32>
    %53 = arith.addf %17, %18 : vector<2x8x8xf32>
    %cst_15 = arith.constant 0.000000e+00 : f32
    %54 = vector.shape_cast %26 : vector<2x8x1xi1> to vector<2x8x1xi1>
    %55 = vector.broadcast %54 : vector<2x8x1xi1> to vector<2x8x8xi1>
    %56 = vector.broadcast %cst_15 : f32 to vector<2x8x8xf32>
    %57 = arith.select %55, %56, %53 : vector<2x8x8xi1>, vector<2x8x8xf32>
    %58 = arith.addf %52, %57 : vector<2x8x8xf32>
    %59 = arith.addf %13, %16 : vector<2x8x8xf32>
    %cst_16 = arith.constant 0.000000e+00 : f32
    %60 = vector.shape_cast %28 : vector<2x8x1xi1> to vector<2x8x1xi1>
    %61 = vector.broadcast %60 : vector<2x8x1xi1> to vector<2x8x8xi1>
    %62 = vector.broadcast %cst_16 : f32 to vector<2x8x8xf32>
    %63 = arith.select %61, %62, %59 : vector<2x8x8xi1>, vector<2x8x8xf32>
    %64 = arith.addf %58, %63 : vector<2x8x8xf32>
    %cst_17 = arith.constant 0.000000e+00 : f32
    %65 = vector.shape_cast %29 : vector<2x8x1xi1> to vector<2x8x1xi1>
    %66 = vector.broadcast %65 : vector<2x8x1xi1> to vector<2x8x8xi1>
    %67 = vector.broadcast %cst_17 : f32 to vector<2x8x8xf32>
    %68 = arith.select %66, %67, %19 : vector<2x8x8xi1>, vector<2x8x8xf32>
    %69 = arith.addf %64, %68 : vector<2x8x8xf32>
    %cst_18 = arith.constant 0.111111112 : f32
    %70 = vector.broadcast %cst_18 : f32 to vector<2x8x8xf32>
    %71 = arith.mulf %69, %70 : vector<2x8x8xf32>
    %cst_19 = arith.constant dense<0.000000e+00> : vector<2x8xf32>
    %72 = vector.multi_reduction <add>, %49, %cst_19 [2] : vector<2x8x8xf32> to vector<2x8xf32>
    %73 = vector.shape_cast %72 : vector<2x8xf32> to vector<2x8x1xf32>
    %cst_20 = arith.constant dense<0.000000e+00> : vector<2x8xf32>
    %74 = vector.multi_reduction <add>, %71, %cst_20 [2] : vector<2x8x8xf32> to vector<2x8xf32>
    %75 = vector.shape_cast %74 : vector<2x8xf32> to vector<2x8x1xf32>
    %76 = arith.addf %73, %75 : vector<2x8x1xf32>
    %cst_21 = arith.constant 6.250000e-02 : f32
    %77 = vector.broadcast %cst_21 : f32 to vector<2x8x1xf32>
    %78 = arith.mulf %76, %77 : vector<2x8x1xf32>
    %79 = vector.broadcast %78 : vector<2x8x1xf32> to vector<2x8x8xf32>
    %80 = arith.subf %49, %79 : vector<2x8x8xf32>
    %81 = vector.broadcast %78 : vector<2x8x1xf32> to vector<2x8x8xf32>
    %82 = arith.subf %71, %81 : vector<2x8x8xf32>
    %83 = arith.mulf %80, %80 : vector<2x8x8xf32>
    %cst_22 = arith.constant dense<0.000000e+00> : vector<2x8xf32>
    %84 = vector.multi_reduction <add>, %83, %cst_22 [2] : vector<2x8x8xf32> to vector<2x8xf32>
    %85 = vector.shape_cast %84 : vector<2x8xf32> to vector<2x8x1xf32>
    %86 = arith.mulf %82, %82 : vector<2x8x8xf32>
    %cst_23 = arith.constant dense<0.000000e+00> : vector<2x8xf32>
    %87 = vector.multi_reduction <add>, %86, %cst_23 [2] : vector<2x8x8xf32> to vector<2x8xf32>
    %88 = vector.shape_cast %87 : vector<2x8xf32> to vector<2x8x1xf32>
    %89 = arith.addf %85, %88 : vector<2x8x1xf32>
    %cst_24 = arith.constant 6.250000e-02 : f32
    %90 = vector.broadcast %cst_24 : f32 to vector<2x8x1xf32>
    %91 = arith.mulf %89, %90 : vector<2x8x1xf32>
    %cst_25 = arith.constant 9.99999974E-6 : f32
    %92 = vector.broadcast %cst_25 : f32 to vector<2x8x1xf32>
    %93 = arith.addf %91, %92 : vector<2x8x1xf32>
    %94 = math.rsqrt %93 : vector<2x8x1xf32>
    %95 = tpu.concatenate %80, %82 in 2 : vector<2x8x8xf32>, vector<2x8x8xf32> -> vector<2x8x16xf32>
    %96 = vector.broadcast %94 : vector<2x8x1xf32> to vector<2x8x16xf32>
    %97 = arith.mulf %95, %96 : vector<2x8x16xf32>
    %98 = vector.shape_cast %97 : vector<2x8x16xf32> to vector<16x16xf32>
    %c0_26 = arith.constant 0 : index
    %c0_27 = arith.constant 0 : index
    %99 = vector.load %arg4[%c0_26, %c0_27] : memref<16x16xf32, #tpu.memory_space<vmem>>, vector<16x16xf32>
    %cst_28 = arith.constant dense<0.000000e+00> : vector<16x16xf32>
    %100 = tpu.matmul %98, %99, %cst_28 {dimension_numbers = #tpu.dot_dimension_numbers<[1], [0], [0], [1], [0, 0, 1, 1], [], []>} : vector<16x16xf32>, vector<16x16xf32>, vector<16x16xf32> -> vector<16x16xf32>
    %c0_29 = arith.constant 0 : index
    %c0_30 = arith.constant 0 : index
    %101 = vector.load %arg5[%c0_29, %c0_30] : memref<16x16xf32, #tpu.memory_space<vmem>>, vector<16x16xf32>
    %102 = arith.addf %100, %101 : vector<16x16xf32>
    %c0_31 = arith.constant 0 : index
    %c0_32 = arith.constant 0 : index
    %c0_33 = arith.constant 0 : index
    %103 = vector.load %arg6[%c0_31, %c0_32, %c0_33] : memref<1x16x16xf32, #tpu.memory_space<vmem>>, vector<1x16x16xf32>
    %104 = vector.shape_cast %103 : vector<1x16x16xf32> to vector<16x16xf32>
    %105 = vector.shape_cast %102 : vector<16x16xf32> to vector<1x16x16xf32>
    tpu.vector_store %arg6[%c0_31, %c0_32, %c0_33], %105 {strides = array<i32>} : memref<1x16x16xf32, #tpu.memory_space<vmem>>, vector<1x16x16xf32>,
    return
  }
  func.func @transform_0(%arg0: i32, %arg1: i32) -> (i32, i32, i32, i32, i32) {
    %c0_i32 = arith.constant 0 : i32
    %c0_i32_0 = arith.constant 0 : i32
    %c0_i32_1 = arith.constant 0 : i32
    %c0_i32_2 = arith.constant 0 : i32
    return %arg0, %arg1, %c0_i32, %c0_i32_0, %c0_i32_1 : i32, i32, i32, i32, i32
  }
  func.func @transform_1(%arg0: i32, %arg1: i32) -> (i32, i32, i32, i32, i32) {
    %c2_i32 = arith.constant 2 : i32
    %0 = arith.muli %arg1, %c2_i32 : i32
    %c1_i32 = arith.constant 1 : i32
    %1 = arith.subi %0, %c1_i32 : i32
    %c0_i32 = arith.constant 0 : i32
    %2 = arith.maxsi %1, %c0_i32 : i32
    %c1_i32_0 = arith.constant 1 : i32
    %c0_i32_1 = arith.constant 0 : i32
    %c0_i32_2 = arith.constant 0 : i32
    %c0_i32_3 = arith.constant 0 : i32
    return %arg0, %2, %c1_i32_0, %c0_i32_1, %c0_i32_2 : i32, i32, i32, i32, i32
  }
  func.func @transform_2(%arg0: i32, %arg1: i32) -> (i32, i32) {
    %c0_i32 = arith.constant 0 : i32
    %c0_i32_0 = arith.constant 0 : i32
    %c0_i32_1 = arith.constant 0 : i32
    return %c0_i32, %c0_i32_0 : i32, i32
  }
  func.func @transform_3(%arg0: i32, %arg1: i32) -> (i32, i32) {
    %c0_i32 = arith.constant 0 : i32
    %c0_i32_0 = arith.constant 0 : i32
    return %arg1, %c0_i32 : i32, i32
  }
  func.func @transform_4(%arg0: i32, %arg1: i32) -> (i32, i32, i32) {
    %c0_i32 = arith.constant 0 : i32
    %c0_i32_0 = arith.constant 0 : i32
    return %arg0, %arg1, %c0_i32 : i32, i32, i32
  }
}

</mosaic_0001>

<llo_original>
// kernel: tpu_custom_call.1
$region0: #{tpu_custom_call.1}
  #allocation0 [shape = 'u32[]', space=smem, size = 0x4, offset = 0x4, fixed_abs, tag = 'smem constant byte address 0x4 - core index']
  #allocation1 [shape = 'u32[144,128]{1,0:T(1,128)}', space=vmem, size = 0x12000, scoped, tag = 'internal scratch']
  %s0 = inlined_call_operand.hbm [shape: f32[2,8,2,8,16], index: 0, kind: input, shape index: {}]
  %s1 = inlined_call_operand.hbm [shape: f32[2,8,2,8,16], index: 1, kind: input, shape index: {}]
  %s2 = inlined_call_operand.vmem [shape: f32[16,16], index: 2, kind: input, shape index: {}]
  %s3 = inlined_call_operand.vmem [shape: f32[64,16], index: 3, kind: input, shape index: {}]
  %s4 = inlined_call_operand.vmem [shape: f32[2,64,16], index: 4, kind: output, shape index: {}]
  %s5 = sld [smem:[#allocation0]]
  $region57: #{tpu_custom_call.1} parent=0
    _
  %s7 = ssub.s32 1, %s5
  %s8 = scalar_select 0, %s7, %s5
  $region1: #{tpu_custom_call.1} parent=0
    #allocation2 [shape = 'u8[32768]{0}', space=vmem, size = 0x8000, scoped, tag = 'input window, operand 0']
    #allocation3 [shape = 's32[2]{0}', space=sflag, size = 0x8, scoped, tag = 'scoped memory for tpu_custom_call.1']
    #allocation4 [shape = 'u8[8192]{0}', space=vmem, size = 0x2000, scoped, tag = 'input window, operand 1']
    #allocation5 [shape = 's32[2]{0}', space=sflag, size = 0x8, scoped, tag = 'scoped memory for tpu_custom_call.1']
    %9 = vsyncpa [#allocation3], 0
    %s10 = scalar_lea.sflag [#allocation3], 1
    %11 = vsyncpa %s10, 0
    %12 = vsyncpa [#allocation5], 0
    %s13 = scalar_lea.sflag [#allocation5], 1
    %14 = vsyncpa %s13, 0
    loop: start=0, step=1, limit=10
    $region2: #{tpu_custom_call.1} parent=1 // loop_pre_header
      _
    $region3: #{tpu_custom_call.1} parent=1 // loop_header
      %s16 = sphi 0, %s20
      %p17 = scmp.ge.s32.totalorder %s16, 10
      %s23 = sphi 0, %s35
      %s24 = sphi 0, %s31
      %s25 = sphi 0, %s23
      %s26 = sphi 0, %s24
      %s27 = sphi 0, %s25
      %s28 = sphi 0, %s26
      %s40 = sphi 0, %s42
      %s43 = sphi 0, %s40
      %s44 = sphi 0, %s43
      %s60 = sphi 0, %s44
      %s76 = sphi 0, %s78
      %s79 = sphi 0, %s76
      %s80 = sphi 0, %s79
      %s96 = sphi 0, %s80
      %s100 = sphi 0, %s100
      %s102 = sphi 0, %s100
      %s103 = sphi 0, %s102
      %s117 = sphi 0, %s103
      %s123 = sphi 0, %s125
      %s126 = sphi 0, %s123
      %s127 = sphi 0, %s126
      %s143 = sphi 0, %s127
      %s151 = sphi 0, %s153
      %s154 = sphi 0, %s151
      %s155 = sphi 0, %s154
      %s171 = sphi 0, %s155
    $region4: #{tpu_custom_call.1} parent=1 // loop_header_branch
      %19 = sbr.rel (%p17) target = $region8
    $region5: #{tpu_custom_call.1} parent=1 // loop_body
      %s21 = ssub.s32 %s16, 1
      %s22 = ssub.s32 %s16, 2
      %s29 = sadd.s32 1, %s24
      %p30 = scmp.ge.s32.totalorder %s29, 4
      %s31 = scalar_select %p30, 0, %s29
      %s32 = sadd.s32 1, %s23
      %s33 = scalar_select %p30, %s32, %s23
      %p34 = scmp.ge.s32.totalorder %s33, 2
      %s35 = scalar_select %p34, 0, %s33
      %s36 = ssub.s32 %s23, %s35
      %s37 = ssub.s32 %s24, %s31
      %s38 = sor.u32 %s36, %s37
      %p39 = scmp.eq.s32.totalorder %s38, 0
      %s41 = sadd.s32 %s40, 1
      %s42 = scalar_select %p39, %s40, %s41
      %p45 = pneg %p39
      %p46 = scmp.eq.s32.totalorder %s16, 7
      %p47 = por %p45, %p46
      %p48 = scmp.ne.s32.totalorder %s40, %s43
      %p49 = scmp.eq.s32.totalorder %s16, 0
      %p50 = por %p48, %p49
      %p51 = scmp.ne.s32.totalorder %s40, %s43
      %p52 = scmp.eq.s32.totalorder %s21, 7
      %p53 = por %p51, %p52
      %p54 = scmp.ne.s32.totalorder %s43, %s44
      %p55 = scmp.eq.s32.totalorder %s21, 0
      %p56 = por %p54, %p55
      %p57 = scmp.ne.s32.totalorder %s43, %s44
      %p58 = scmp.eq.s32.totalorder %s22, 7
      %p59 = por %p57, %p58
      %p61 = scmp.ne.s32.totalorder %s44, %s60
      %p62 = scmp.eq.s32.totalorder %s22, 0
      %p63 = por %p61, %p62
      %s64 = smul.u32 %s24, 2
      %s65 = ssub.s32 %s64, 1
      %p66 = scmp.gt.s32.totalorder %s65, 0
      %s67 = scalar_select %p66, %s65, 0
      %s68 = smul.u32 %s31, 2
      %s69 = ssub.s32 %s68, 1
      %p70 = scmp.gt.s32.totalorder %s69, 0
      %s71 = scalar_select %p70, %s69, 0
      %s72 = ssub.s32 %s23, %s35
      %s73 = ssub.s32 %s67, %s71
      %s74 = sor.u32 %s72, %s73
      %p75 = scmp.eq.s32.totalorder %s74, 0
      %s77 = sadd.s32 %s76, 1
      %s78 = scalar_select %p75, %s76, %s77
      %p81 = pneg %p75
      %p82 = scmp.eq.s32.totalorder %s16, 7
      %p83 = por %p81, %p82
      %p84 = scmp.ne.s32.totalorder %s76, %s79
      %p85 = scmp.eq.s32.totalorder %s16, 0
      %p86 = por %p84, %p85
      %p87 = scmp.ne.s32.totalorder %s76, %s79
      %p88 = scmp.eq.s32.totalorder %s21, 7
      %p89 = por %p87, %p88
      %p90 = scmp.ne.s32.totalorder %s79, %s80
      %p91 = scmp.eq.s32.totalorder %s21, 0
      %p92 = por %p90, %p91
      %p93 = scmp.ne.s32.totalorder %s79, %s80
      %p94 = scmp.eq.s32.totalorder %s22, 7
      %p95 = por %p93, %p94
      %p97 = scmp.ne.s32.totalorder %s80, %s96
      %p98 = scmp.eq.s32.totalorder %s22, 0
      %p99 = por %p97, %p98
      %s101 = sadd.s32 %s100, 1
      %p104 = scmp.eq.s32.totalorder %s16, 7
      %p105 = scmp.ne.s32.totalorder %s100, %s102
      %p106 = scmp.eq.s32.totalorder %s16, 0
      %p107 = por %p105, %p106
      %p108 = scmp.ne.s32.totalorder %s100, %s102
      %p109 = scmp.eq.s32.totalorder %s21, 7
      %p110 = por %p108, %p109
      %p111 = scmp.ne.s32.totalorder %s102, %s103
      %p112 = scmp.eq.s32.totalorder %s21, 0
      %p113 = por %p111, %p112
      %p114 = scmp.ne.s32.totalorder %s102, %s103
      %p115 = scmp.eq.s32.totalorder %s22, 7
      %p116 = por %p114, %p115
      %p118 = scmp.ne.s32.totalorder %s103, %s117
      %p119 = scmp.eq.s32.totalorder %s22, 0
      %p120 = por %p118, %p119
      %s121 = ssub.s32 %s24, %s31
      %p122 = scmp.eq.s32.totalorder %s121, 0
      %s124 = sadd.s32 %s123, 1
      %s125 = scalar_select %p122, %s123, %s124
      %p128 = pneg %p122
      %p129 = scmp.eq.s32.totalorder %s16, 7
      %p130 = por %p128, %p129
      %p131 = scmp.ne.s32.totalorder %s123, %s126
      %p132 = scmp.eq.s32.totalorder %s16, 0
      %p133 = por %p131, %p132
      %p134 = scmp.ne.s32.totalorder %s123, %s126
      %p135 = scmp.eq.s32.totalorder %s21, 7
      %p136 = por %p134, %p135
      %p137 = scmp.ne.s32.totalorder %s126, %s127
      %p138 = scmp.eq.s32.totalorder %s21, 0
      %p139 = por %p137, %p138
      %p140 = scmp.ne.s32.totalorder %s126, %s127
      %p141 = scmp.eq.s32.totalorder %s22, 7
      %p142 = por %p140, %p141
      %p144 = scmp.ne.s32.totalorder %s127, %s143
      %p145 = scmp.eq.s32.totalorder %s22, 0
      %p146 = por %p144, %p145
      %s147 = ssub.s32 %s23, %s35
      %s148 = ssub.s32 %s24, %s31
      %s149 = sor.u32 %s147, %s148
      %p150 = scmp.eq.s32.totalorder %s149, 0
      %s152 = sadd.s32 %s151, 1
      %s153 = scalar_select %p150, %s151, %s152
      %p156 = pneg %p150
      %p157 = scmp.eq.s32.totalorder %s16, 7
      %p158 = por %p156, %p157
      %p159 = scmp.ne.s32.totalorder %s151, %s154
      %p160 = scmp.eq.s32.totalorder %s16, 0
      %p161 = por %p159, %p160
      %p162 = scmp.ne.s32.totalorder %s151, %s154
      %p163 = scmp.eq.s32.totalorder %s21, 7
      %p164 = por %p162, %p163
      %p165 = scmp.ne.s32.totalorder %s154, %s155
      %p166 = scmp.eq.s32.totalorder %s21, 0
      %p167 = por %p165, %p166
      %p168 = scmp.ne.s32.totalorder %s154, %s155
      %p169 = scmp.eq.s32.totalorder %s22, 7
      %p170 = por %p168, %p169
      %p172 = scmp.ne.s32.totalorder %s155, %s171
      %p173 = scmp.eq.s32.totalorder %s22, 0
      %p174 = por %p172, %p173
      %p175 = scmp.le.s32.totalorder 1, %s16
      %p176 = scmp.lt.s32.totalorder %s16, 9
      %p177 = pnand %p175, %p176
      %p178 = pneg %p177
      // Predicated region
      $region9: #{tpu_custom_call.1} parent=5 // pred_check
        _
      $region10: #{tpu_custom_call.1} parent=5 // pred_check_branch
        %180 = sbr.rel (%p177) target = $region12
      $region11: #{tpu_custom_call.1} parent=5 // pred_region
        %s181 = ssub.s32 %s16, 1
        // Predicated region
        $region13: #{tpu_custom_call.1} parent=11 // pred_check
          %p182 = pneg %p113
        $region14: #{tpu_custom_call.1} parent=11 // pred_check_branch
          %184 = sbr.rel (%p182) target = $region16
        $region15: #{tpu_custom_call.1} parent=11 // pred_region
          _
        $region16: #{tpu_custom_call.1} parent=11 // pred_fallthru
          _
      $region12: #{tpu_custom_call.1} parent=5 // pred_fallthru
        _
      %p185 = scmp.lt.s32.totalorder %s16, 8
      // Predicated region
      $region17: #{tpu_custom_call.1} parent=5 // pred_check
        %p186 = pneg %p185
      $region18: #{tpu_custom_call.1} parent=5 // pred_check_branch
        %188 = sbr.rel (%p186) target = $region20
      $region19: #{tpu_custom_call.1} parent=5 // pred_region
        // Predicated region
        $region21: #{tpu_custom_call.1} parent=19 // pred_check
          %p189 = pneg %p50
        $region22: #{tpu_custom_call.1} parent=19 // pred_check_branch
          %191 = sbr.rel (%p189) target = $region24
        $region23: #{tpu_custom_call.1} parent=19 // pred_region
          %s192 = sand.u32 %s40, 1
          %s193 = scalar_lea.sflag [#allocation3], %s192
          %s194 = sand.u32 %s40, 1
          %s195 = smul.addr %s194, 32
          %s196 = scalar_lea.vmem [#allocation2], %s195
          %s197 = smul.u32 2, %s24
          %s199 = ssub.s32 512, 512
          %200 = vsyncadd %s193, %s199
          %s201 = smul.addr %s197, 2
          %s202 = smul.addr %s23, 16
          %s203 = sadd.s32 %s201, %s202
          %s204 = smul.addr %s203, 128
          %s205 = scalar_lea.hbm %s0, %s204
          %s206 = sshll.u32 %s196, 4
          %s207 = int_to_ptr.vmem [resolvable:$true] %s206
          %212 = dma.hbm_to_vmem [thread:$0]  %s205, 512, %s207, %s193, 128, 128, 8
        $region24: #{tpu_custom_call.1} parent=19 // pred_fallthru
          _
        // Predicated region
        $region25: #{tpu_custom_call.1} parent=19 // pred_check
          %p213 = pneg %p86
        $region26: #{tpu_custom_call.1} parent=19 // pred_check_branch
          %215 = sbr.rel (%p213) target = $region28
        $region27: #{tpu_custom_call.1} parent=19 // pred_region
          %s216 = sand.u32 %s76, 1
          %s217 = scalar_lea.sflag [#allocation5], %s216
          %s218 = sand.u32 %s76, 1
          %s219 = smul.addr %s218, 8
          %s220 = scalar_lea.vmem [#allocation4], %s219
          %s221 = smul.u32 %s24, 2
          %s222 = ssub.s32 %s221, 1
          %p223 = scmp.gt.s32.totalorder %s222, 0
          %s224 = scalar_select %p223, %s222, 0
          %s226 = ssub.s32 128, 128
          %227 = vsyncadd %s217, %s226
          %s228 = smul.addr %s224, 2
          %s229 = sadd.s32 1, %s228
          %s230 = smul.addr %s23, 16
          %s231 = sadd.s32 %s229, %s230
          %s232 = smul.addr %s231, 128
          %s233 = scalar_lea.hbm %s1, %s232
          %s235 = sshll.u32 %s220, 4
          %s236 = int_to_ptr.vmem [resolvable:$true] %s235
          %238 = dma.hbm_to_vmem [thread:$0]  %s233, 128, %s236, %s217
        $region28: #{tpu_custom_call.1} parent=19 // pred_fallthru
          _
        // Predicated region
        $region29: #{tpu_custom_call.1} parent=19 // pred_check
          %p239 = pneg %p133
        $region30: #{tpu_custom_call.1} parent=19 // pred_check_branch
          %241 = sbr.rel (%p239) target = $region32
        $region31: #{tpu_custom_call.1} parent=19 // pred_region
          %s242 = smul.u32 2, %s24
          %p243 = scmp.lt.s32.totalorder %s242, 7
          %s244 = scalar_select %p243, %s242, 7
          %s245 = smul.addr %s244, 8
          %s246 = scalar_lea.vmem %s3, %s245
          %s247 = smul.u32 2, %s24
        $region32: #{tpu_custom_call.1} parent=19 // pred_fallthru
          _
      $region20: #{tpu_custom_call.1} parent=5 // pred_fallthru
        _
      %p248 = scmp.le.s32.totalorder 1, %s16
      %p249 = scmp.lt.s32.totalorder %s16, 9
      %p250 = pnand %p248, %p249
      %p251 = pneg %p250
      // Predicated region
      $region33: #{tpu_custom_call.1} parent=5 // pred_check
        _
      $region34: #{tpu_custom_call.1} parent=5 // pred_check_branch
        %253 = sbr.rel (%p250) target = $region36
      $region35: #{tpu_custom_call.1} parent=5 // pred_region
        %s254 = ssub.s32 %s16, 1
        %s255 = sand.u32 %s43, 1
        %s256 = scalar_lea.sflag [#allocation3], %s255
        %s257 = sand.u32 %s43, 1
        %s258 = smul.addr %s257, 32
        %s259 = scalar_lea.vmem [#allocation2], %s258
        // Predicated region
        $region37: #{tpu_custom_call.1} parent=35 // pred_check
          %p260 = pneg %p56
        $region38: #{tpu_custom_call.1} parent=35 // pred_check_branch
          %262 = sbr.rel (%p260) target = $region40
        $region39: #{tpu_custom_call.1} parent=35 // pred_region
          %263 = dma.done %s256, 512
        $region40: #{tpu_custom_call.1} parent=35 // pred_fallthru
          _
        %s264 = sand.u32 %s79, 1
        %s265 = scalar_lea.sflag [#allocation5], %s264
        %s266 = sand.u32 %s79, 1
        %s267 = smul.addr %s266, 8
        %s268 = scalar_lea.vmem [#allocation4], %s267
        // Predicated region
        $region41: #{tpu_custom_call.1} parent=35 // pred_check
          %p269 = pneg %p92
        $region42: #{tpu_custom_call.1} parent=35 // pred_check_branch
          %271 = sbr.rel (%p269) target = $region44
        $region43: #{tpu_custom_call.1} parent=35 // pred_region
          %272 = dma.done %s265, 128
        $region44: #{tpu_custom_call.1} parent=35 // pred_fallthru
          _
        %s273 = sand.u32 %s43, 1
        %s274 = scalar_lea.sflag [#allocation3], %s273
        %s275 = sand.u32 %s43, 1
        %s276 = smul.addr %s275, 32
        %s277 = scalar_lea.vmem [#allocation2], %s276
        %p278 = pneg %p56
        %p279 = pneg %p53
        %s280 = sand.u32 %s79, 1
        %s281 = scalar_lea.sflag [#allocation5], %s280
        %s282 = sand.u32 %s79, 1
        %s283 = smul.addr %s282, 8
        %s284 = scalar_lea.vmem [#allocation4], %s283
        %p285 = pneg %p92
        %p286 = pneg %p89
        %p287 = pneg %p113
        %p288 = pneg %p110
        %s289 = smul.u32 2, %s26
        %p290 = scmp.lt.s32.totalorder %s289, 7
        %s291 = scalar_select %p290, %s289, 7
        %s292 = smul.addr %s291, 8
        %s293 = scalar_lea.vmem %s3, %s292
        %p294 = pneg %p139
        %p295 = pneg %p136
        %p296 = pneg %p167
        %p297 = pneg %p164
        %s298 = smul.u32 2, %s26
        %p299 = scmp.lt.s32.totalorder %s25, 1
        %s300 = scalar_select %p299, %s25, 1
        %p301 = scmp.lt.s32.totalorder %s298, 7
        %s302 = scalar_select %p301, %s298, 7
        %s303 = smul.addr %s300, 8
        %s304 = sadd.s32 %s302, %s303
        %s305 = smul.addr %s304, 8
        %s306 = scalar_lea.vmem %s4, %s305
        %s307 = smul.u32 2, %s26
        %s308 = smul.u32 %s26, 2
        %s309 = ssub.s32 %s308, 1
        %p310 = scmp.gt.s32.totalorder %s309, 0
        %s311 = scalar_select %p310, %s309, 0
        %s312 = smul.u32 2, %s26
        %p313 = scmp.lt.s32.totalorder %s312, 7
        %s314 = scalar_select %p313, %s312, 7
        %s315 = smul.addr %s314, 8
        %s316 = scalar_lea.vmem %s3, %s315
        %s317 = smul.u32 2, %s26
        %s318 = smul.u32 2, %s26
        %p319 = scmp.lt.s32.totalorder %s25, 1
        %s320 = scalar_select %p319, %s25, 1
        %p321 = scmp.lt.s32.totalorder %s318, 7
        %s322 = scalar_select %p321, %s318, 7
        %s323 = smul.addr %s320, 8
        %s324 = sadd.s32 %s322, %s323
        %s325 = smul.addr %s324, 8
        %s326 = scalar_lea.vmem %s4, %s325
        %s327 = smul.u32 2, %s26
        %v328 = vld [vmem:[%s259] sm:$0xff]
        %v329 = vld [vmem:[%s259 + $0x8] sm:$0xff]
        %v330 = vld [vmem:[%s259 + $0x10] sm:$0xff]
        %v331 = vld [vmem:[%s259 + $0x18] sm:$0xff]
        %v332 = vld [vmem:[%s268] sm:$0xff]
        %335 = vrot.lane.b32.xlu0 %v328, 120
        %v336 = vpop.permute.xlu0 %335
        %337 = vrot.lane.b32.xlu0 %v330, 120
        %v338 = vpop.permute.xlu0 %337
        %v341 = vrot.slane %v336, 7
        %v342 = vrot.slane %v338, 7
        %345 = vrot.lane.b32.xlu0 %v329, 120
        %v346 = vpop.permute.xlu0 %345
        %347 = vrot.lane.b32.xlu0 %v331, 120
        %v348 = vpop.permute.xlu0 %347
        %v351 = vrot.slane %v346, 7
        %v352 = vrot.slane %v348, 7
        %354 = vrot.lane.b32.xlu0 %v332, 120
        %v355 = vpop.permute.xlu0 %354
        %v357 = vrot.slane %v355, 7
        %v358 = vlaneseq
        %v359 = vshrl.u32 %v358, 7
        %p360 = scmp.eq.s32.totalorder %s26, 0
        %s361 = scalar_select %p360, 1, 0
        %v362 = vstv %s361
        %vm363 = vcmp.eq.s32.totalorder %v362, 1
        %vm364 = vcmp.eq.s32.totalorder %v359, 0
        %vm365 = vmor %vm363, %vm364
        %vm366 = vmor 0, %vm364
        %v367 = vmax.f32 %v328, %v336
        %v368 = vmax.f32 %v330, %v338
        %v369 = vmax.f32 %v329, %v346
        %v370 = vmax.f32 %v331, %v348
        %v371 = vmax.f32 %v367, %v369
        %v372 = vmax.f32 %v368, %v370
        %v373 = vmax.f32 %v332, %v355
        %v374 = vsel %vm363, 1, 0
        %vm375 = vcmp.eq.s32.totalorder %v374, 1
        %v376 = vsel %vm375, -inf, %v373
        %v377 = vsel 0, -inf, %v369
        %v378 = vmax.f32 %v371, %v376
        %v379 = vmax.f32 %v372, %v377
        %v380 = vmax.f32 %v341, %v351
        %v381 = vmax.f32 %v342, %v352
        %v382 = vsel %vm364, 1, 0
        %vm383 = vcmp.eq.s32.totalorder %v382, 1
        %v384 = vsel %vm383, -inf, %v380
        %v385 = vsel %vm383, -inf, %v381
        %v386 = vmax.f32 %v378, %v384
        %v387 = vmax.f32 %v379, %v385
        %v388 = vsel %vm365, 1, 0
        %v389 = vsel %vm366, 1, 0
        %vm390 = vcmp.eq.s32.totalorder %v388, 1
        %vm391 = vcmp.eq.s32.totalorder %v389, 1
        %v392 = vsel %vm390, -inf, %v357
        %v393 = vsel %vm391, -inf, %v351
        %v394 = vmax.f32 %v386, %v392
        %v395 = vmax.f32 %v387, %v393
        %v396 = vadd.f32 %v328, %v336
        %v397 = vadd.f32 %v330, %v338
        %v398 = vadd.f32 %v329, %v346
        %v399 = vadd.f32 %v331, %v348
        %v400 = vadd.f32 %v396, %v398
        %v401 = vadd.f32 %v397, %v399
        %v402 = vadd.f32 %v332, %v355
        %v403 = vsel %vm375, 0.0, %v402
        %v404 = vsel 0, 0.0, %v398
        %v405 = vadd.f32 %v400, %v403
        %v406 = vadd.f32 %v401, %v404
        %v407 = vadd.f32 %v341, %v351
        %v408 = vadd.f32 %v342, %v352
        %v409 = vsel %vm383, 0.0, %v407
        %v410 = vsel %vm383, 0.0, %v408
        %v411 = vadd.f32 %v405, %v409
        %v412 = vadd.f32 %v406, %v410
        %v413 = vsel %vm390, 0.0, %v357
        %v414 = vsel %vm391, 0.0, %v351
        %v415 = vadd.f32 %v411, %v413
        %v416 = vadd.f32 %v412, %v414
        %v417 = vmul.f32 %v415, 0.11111111
        %v418 = vmul.f32 %v416, 0.11111111
        %vm419 = vcmask 64512
        %v420 = vsel %vm419, %v394, 0.0
        %421 = vadd.xlane.f32.xlu0 %v420
        %v422 = vpop.xlane.xlu0 %421
        %v423 = vsel %vm419, %v395, 0.0
        %424 = vadd.xlane.f32.xlu0 %v423
        %v425 = vpop.xlane.xlu0 %424
        %v426 = vsel %vm419, %v417, 0.0
        %427 = vadd.xlane.f32.xlu0 %v426
        %v428 = vpop.xlane.xlu0 %427
        %v429 = vsel %vm419, %v418, 0.0
        %430 = vadd.xlane.f32.xlu0 %v429
        %v431 = vpop.xlane.xlu0 %430
        %v432 = vadd.f32 %v422, %v428
        %v433 = vadd.f32 %v425, %v431
        %v434 = vmul.f32 %v432, 0.0625
        %v435 = vmul.f32 %v433, 0.0625
        %v436 = vsub.f32 %v394, %v434
        %v437 = vsub.f32 %v395, %v435
        %v438 = vsub.f32 %v417, %v434
        %v439 = vsub.f32 %v418, %v435
        %v440 = vmul.f32 %v436, %v436
        %v441 = vmul.f32 %v437, %v437
        %v442 = vsel %vm419, %v440, 0.0
        %443 = vadd.xlane.f32.xlu0 %v442
        %v444 = vpop.xlane.xlu0 %443
        %v445 = vsel %vm419, %v441, 0.0
        %446 = vadd.xlane.f32.xlu0 %v445
        %v447 = vpop.xlane.xlu0 %446
        %v448 = vmul.f32 %v438, %v438
        %v449 = vmul.f32 %v439, %v439
        %v450 = vsel %vm419, %v448, 0.0
        %451 = vadd.xlane.f32.xlu0 %v450
        %v452 = vpop.xlane.xlu0 %451
        %v453 = vsel %vm419, %v449, 0.0
        %454 = vadd.xlane.f32.xlu0 %v453
        %v455 = vpop.xlane.xlu0 %454
        %v456 = vadd.f32 %v444, %v452
        %v457 = vadd.f32 %v447, %v455
        %v458 = vmul.f32 %v456, 0.0625
        %v459 = vmul.f32 %v457, 0.0625
        %v460 = vadd.f32 %v458, 1e-05
        %v461 = vadd.f32 %v459, 1e-05
        %v462 = vrsqrt.pop %v460
        %v463 = vrsqrt.pop %v461
        %466 = vrot.lane.b32.xlu0 %v438, 8
        %v467 = vpop.permute.xlu0 %466
        %468 = vrot.lane.b32.xlu0 %v439, 8
        %v469 = vpop.permute.xlu0 %468
        %v472 = vsel %vm419, %v436, %v467
        %v473 = vsel %vm419, %v437, %v469
        %v474 = vmul.f32 %v472, %v462
        %v475 = vmul.f32 %v473, %v463
        %v476 = vld [vmem:[%s2] sm:$0xff]
        %v477 = vld [vmem:[%s2 + $0x8] sm:$0xff]
        %v478 = vld [vmem:[%s316] sm:$0xff]
        %v479 = vld [vmem:[%s316 + $0x8] sm:$0xff]
        %vm480 = vcmask 130048
        %v482 = vsel %vm480, %v474, 0
        %v485 = vsel %vm480, %v475, 0
        %487 = vmatprep.subr.mxu0 0.0
        %488 = vmatpush1.msra.mxu0 %v476
        %489 = vmatprep.subr.mxu0 0.0
        %490 = vmatpush1.msra.mxu0 %v477
        %491 = vmatprep.subr.mxu0 0.0
        %492 = vmatpush1.msra.mxu0 0.0
        %493 = vmatprep.subr.mxu0 0.0
        %494 = vmatpush1.msra.mxu0 0.0
        %495 = vmatprep.subr.mxu0 0.0
        %496 = vmatpush1.msra.mxu0 0.0
        %497 = vmatprep.subr.mxu0 0.0
        %498 = vmatpush1.msra.mxu0 0.0
        %499 = vmatprep.subr.mxu0 0.0
        %500 = vmatpush1.msra.mxu0 0.0
        %501 = vmatprep.subr.mxu0 0.0
        %502 = vmatpush1.msra.mxu0 0.0
        %503 = vmatprep.subr.mxu0 0.0
        %504 = vmatpush1.msra.mxu0 0.0
        %505 = vmatprep.subr.mxu0 0.0
        %506 = vmatpush1.msra.mxu0 0.0
        %507 = vmatprep.subr.mxu0 0.0
        %508 = vmatpush1.msra.mxu0 0.0
        %509 = vmatprep.subr.mxu0 0.0
        %510 = vmatpush1.msra.mxu0 0.0
        %511 = vmatprep.subr.mxu0 0.0
        %512 = vmatpush1.msra.mxu0 0.0
        %513 = vmatprep.subr.mxu0 0.0
        %514 = vmatpush1.msra.mxu0 0.0
        %515 = vmatprep.subr.mxu0 0.0
        %516 = vmatpush1.msra.mxu0 0.0
        %517 = vmatprep.subr.mxu0 0.0
        %518 = vmatpush1.msra.mxu0 0.0
        %519 = vmatprep.subr.mxu0 0.0
        %520 = vmatpush1.msra.mxu0 0.0
        %521 = vmatprep.subr.mxu0 0.0
        %522 = vmatpush1.msra.mxu0 0.0
        %523 = vmatprep.subr.mxu0 0.0
        %524 = vmatpush1.msra.mxu0 0.0
        %525 = vmatprep.subr.mxu0 0.0
        %526 = vmatpush1.msra.mxu0 0.0
        %527 = vmatprep.subr.mxu0 0.0
        %528 = vmatpush1.msra.mxu0 0.0
        %529 = vmatprep.subr.mxu0 0.0
        %530 = vmatpush1.msra.mxu0 0.0
        %531 = vmatprep.subr.mxu0 0.0
        %532 = vmatpush1.msra.mxu0 0.0
        %533 = vmatprep.subr.mxu0 0.0
        %534 = vmatpush1.msra.mxu0 0.0
        %535 = vmatprep.subr.mxu0 0.0
        %536 = vmatpush1.msra.mxu0 0.0
        %537 = vmatprep.subr.mxu0 0.0
        %538 = vmatpush1.msra.mxu0 0.0
        %539 = vmatprep.subr.mxu0 0.0
        %540 = vmatpush1.msra.mxu0 0.0
        %541 = vmatprep.subr.mxu0 0.0
        %542 = vmatpush1.msra.mxu0 0.0
        %543 = vmatprep.subr.mxu0 0.0
        %544 = vmatpush1.msra.mxu0 0.0
        %545 = vmatprep.subr.mxu0 0.0
        %546 = vmatpush1.msra.mxu0 0.0
        %547 = vmatprep.subr.mxu0 0.0
        %548 = vmatpush1.msra.mxu0 0.0
        %549 = vmatprep.subr.mxu0 0.0
        %550 = vmatpush1.msra.mxu0 0.0
        %551 = vmatprep.mubr.f32.mxu0 0.0
        %552 = vmatmul.mubr.f32.gmra.mrb[0].mxu0 %v482
        %v553 = vpop.f32.mrb[0].mxu0
        %v554 = vadd.f32 %v478, %v553
        %v555 = vpop.f32.mrb[0].mxu0
        %556 = vmatprep.mubr.f32.mxu0 0.0
        %557 = vmatmul.mubr.f32.gmra.mrb[0].mxu0 %v485
        %v558 = vpop.f32.mrb[0].mxu0
        %v559 = vadd.f32 %v479, %v558
        %v560 = vpop.f32.mrb[0].mxu0
        %561 = vdwg.mxu0
        %562 = vst.msk [vmem:[%s326] sm:$0xff] %vm480, %v554
        %563 = vst.msk [vmem:[%s326 + $0x8] sm:$0xff] %vm480, %v559
        %s564 = smul.u32 2, %s26
        %p565 = scmp.lt.s32.totalorder %s25, 1
        %s566 = scalar_select %p565, %s25, 1
        %p567 = scmp.lt.s32.totalorder %s564, 7
        %s568 = scalar_select %p567, %s564, 7
        %s569 = smul.addr %s566, 8
        %s570 = sadd.s32 %s568, %s569
        %s571 = smul.addr %s570, 8
        %s572 = scalar_lea.vmem %s4, %s571
        // Predicated region
        $region45: #{tpu_custom_call.1} parent=35 // pred_check
          %p573 = pneg %p164
        $region46: #{tpu_custom_call.1} parent=35 // pred_check_branch
          %575 = sbr.rel (%p573) target = $region48
        $region47: #{tpu_custom_call.1} parent=35 // pred_region
          %s576 = smul.u32 2, %s26
        $region48: #{tpu_custom_call.1} parent=35 // pred_fallthru
          _
      $region36: #{tpu_custom_call.1} parent=5 // pred_fallthru
        _
      %p577 = scmp.le.s32.totalorder 2, %s16
      // Predicated region
      $region49: #{tpu_custom_call.1} parent=5 // pred_check
        %p578 = pneg %p577
      $region50: #{tpu_custom_call.1} parent=5 // pred_check_branch
        %580 = sbr.rel (%p578) target = $region52
      $region51: #{tpu_custom_call.1} parent=5 // pred_region
        %s581 = ssub.s32 %s16, 2
        // Predicated region
        $region53: #{tpu_custom_call.1} parent=51 // pred_check
          %p582 = pneg %p170
        $region54: #{tpu_custom_call.1} parent=51 // pred_check_branch
          %584 = sbr.rel (%p582) target = $region56
        $region55: #{tpu_custom_call.1} parent=51 // pred_region
          %s585 = smul.u32 2, %s28
          %p586 = scmp.lt.s32.totalorder %s27, 1
          %s587 = scalar_select %p586, %s27, 1
          %p588 = scmp.lt.s32.totalorder %s585, 7
          %s589 = scalar_select %p588, %s585, 7
          %s590 = smul.addr %s587, 8
          %s591 = sadd.s32 %s589, %s590
          %s592 = smul.addr %s591, 8
          %s593 = scalar_lea.vmem %s4, %s592
        $region56: #{tpu_custom_call.1} parent=51 // pred_fallthru
          _
      $region52: #{tpu_custom_call.1} parent=5 // pred_fallthru
        _
    $region6: #{tpu_custom_call.1} parent=1 // loop_footer
      %s20 = sadd.s32 1, %s16
    $region7: #{tpu_custom_call.1} parent=1 // loop_footer_branch
      %15 = sbr.rel target = $region3
    $region8: #{tpu_custom_call.1} parent=1 // loop_exit
      _
    %594 = vsyncpa [#allocation3], 1
    %s595 = scalar_lea.sflag [#allocation3], 1
    %596 = vsyncpa %s595, 1
    %597 = vsyncpa [#allocation5], 1
    %s598 = scalar_lea.sflag [#allocation5], 1
    %599 = vsyncpa %s598, 1

</llo_original>
